<compile_context>
chip_gen: v7x
topology: tpu7x:2x2x1
jax: 0.10.0
libtpu: 0.0.40
codegen_flags: <defaults>
</compile_context>

<pallas_src>
import functools

import jax
import jax.numpy as jnp
from jax.experimental import pallas as pl
from jax.experimental.pallas import tpu as pltpu


# ----------------------------------------------------------------------------
# Kernel
# ----------------------------------------------------------------------------
def self_attention_kernel(x_ref, wp_ref, bp_ref, vw_ref, o_ref, *,
                          l_chunk, fold_mxu):
    # x_ref : (TB, L, D)  batch block of activations (stream dtype)
    # wp_ref: (D, H)      projector weight, pre-transposed (stream dtype)
    # bp_ref: (1, H)      projector bias (f32)
    # vw_ref: (1, H)      v weight as a row vector (f32)
    # o_ref : (TB, D)     pooled output block
    tb, L, D = x_ref.shape
    f32 = jnp.float32

    wp = wp_ref[...]
    bp = bp_ref[...].astype(f32)
    vw = vw_ref[...].astype(f32)

    # ---- Projection: one MXU matmul over all TB*L rows of the block. -------
    if fold_mxu:
        # Fallback: fold to 2-D (may relayout when (L, D) are not (8, 128)
        # aligned) + plain 2-D matmul.  Known-good lowering.
        x2 = x_ref[...].reshape(tb * L, D)                            # (TB*L, D)
        proj = jnp.tanh(jnp.dot(x2, wp, preferred_element_type=f32) + bp)
        scores = jnp.sum(proj * vw, axis=-1, keepdims=True)          # (TB*L, 1)
        scores = scores.reshape(tb, L, 1)
    else:
        # Preferred: contract D directly on the 3-D block — no in-kernel
        # reshape / VMEM copy of the x tile.
        proj = jax.lax.dot_general(
            x_ref[...], wp, (((2,), (0,)), ((), ())),
            preferred_element_type=f32)                               # (TB, L, H)
        proj = jnp.tanh(proj + bp)
        # Score (N=1 contraction): VPU multiply + lane reduce, not MXU.
        scores = jnp.sum(proj * vw, axis=-1, keepdims=True)          # (TB, L, 1)

    # ---- Softmax over the length axis (dim=1), exact normalization. --------
    m = jnp.max(scores, axis=1, keepdims=True)                       # (TB, 1, 1)
    e = jnp.exp(scores - m)                                          # (TB, L, 1)
    w = e * (1.0 / jnp.sum(e, axis=1, keepdims=True))                # (TB, L, 1)

    # ---- Weighted sum over L (M=1 contraction): VPU multiply + sublane
    # reduce, chunked over L with static offsets so the (TB, Lc, D) temporary
    # stays bounded when tiles are large.
    acc = jnp.zeros((tb, D), f32)
    for l0 in range(0, L, l_chunk):
        lc = min(l_chunk, L - l0)
        xc = x_ref[:, l0:l0 + lc, :].astype(f32)                     # (TB, Lc, D)
        acc = acc + jnp.sum(w[:, l0:l0 + lc, :] * xc, axis=1)        # (TB, D)

    o_ref[...] = acc.astype(o_ref.dtype)


# ----------------------------------------------------------------------------
# One-time lowering probe for the 3-D dot_general path
# ----------------------------------------------------------------------------
_DOT3D_SUPPORTED = None


def _dot3d_supported():
    """Check once that dot_general contracting dim 2 of a 3-D VMEM value
    lowers and computes correctly; otherwise use the fold + 2-D dot path."""
    global _DOT3D_SUPPORTED
    if _DOT3D_SUPPORTED is None:
        def probe(x_ref, w_ref, o_ref):
            o_ref[...] = jax.lax.dot_general(
                x_ref[...], w_ref[...], (((2,), (0,)), ((), ())),
                preferred_element_type=jnp.float32)

        try:
            x = ((jnp.arange(8 * 8 * 32, dtype=jnp.int32) % 7) - 3
                 ).reshape(8, 8, 32).astype(jnp.bfloat16)
            w = ((jnp.arange(32 * 32, dtype=jnp.int32) % 5) - 2
                 ).reshape(32, 32).astype(jnp.bfloat16)
            out = pl.pallas_call(
                probe, out_shape=jax.ShapeDtypeStruct((8, 8, 32), jnp.float32),
            )(x, w)
            ref = jax.lax.dot_general(
                x.astype(jnp.float32), w.astype(jnp.float32),
                (((2,), (0,)), ((), ())))
            _DOT3D_SUPPORTED = bool(
                jnp.allclose(jax.block_until_ready(out), ref, atol=1e-2))
        except Exception:
            _DOT3D_SUPPORTED = False
    return _DOT3D_SUPPORTED


# ----------------------------------------------------------------------------
# Generation-aware sizing helpers
# ----------------------------------------------------------------------------
def _tpu_vmem_capacity_bytes():
    """VMEM capacity of the running chip (128 MiB v5e/v6e, 64 MiB/TC v7x)."""
    try:
        cap = int(pltpu.get_tpu_info().vmem_capacity_bytes)
        if cap > 0:
            return cap
    except Exception:
        pass
    return 64 * 1024 * 1024  # conservative default (v7x per-core size)


def _vmem_budgets():
    cap = _tpu_vmem_capacity_bytes()
    limit = max(32 * 1024 * 1024, min((3 * cap) // 4, 96 * 1024 * 1024))
    # (vmem_limit_bytes, per-step working-set budget with 2x headroom)
    return limit, limit // 2


def _pick_l_chunk(L):
    """Chunk length for the weighted sum: bounds the (TB, Lc, D) temporary and
    the number of unrolled chunks; multiple of 8 and divides L exactly."""
    if L <= 512:
        return L
    hi = max(512, L // 8)
    best = L
    for c in range(8, hi + 1, 8):
        if L % c == 0:
            best = c
    return best


def _pick_batch_block(B, L, D, H, x_bytes, out_bytes, l_chunk, budget):
    """Largest batch block whose per-step working set fits `budget`; prefers
    >= 2 grid steps so the 'parallel' axis can shard across v7x's 2 cores."""
    def working_set(tb):
        return (2 * tb * L * D * x_bytes              # double-buffered x tile
                + 2 * tb * L * H * 4                  # f32 projection + tanh temp
                + 4 * tb * L * 4                      # scores / exp / weights
                + 2 * tb * l_chunk * D * 4            # chunk load + w*x product
                + 2 * tb * D * out_bytes + tb * D * 4   # out blocks + f32 acc
                + 2 * (D * H * x_bytes + 2 * H * 4))    # params
    cands = sorted({c for c in range(8, B + 1, 8) if B % c == 0} | {B})
    for pool in ([c for c in cands if c <= B // 2], cands):
        fits = [c for c in pool if working_set(c) <= budget]
        if fits:
            return max(fits)
    return min(cands)   # nothing fits: smallest legal block, rely on headroom.


# ----------------------------------------------------------------------------
# Wrapper
# ----------------------------------------------------------------------------
def self_attention(x, w_proj, b_proj, w_v, *, tb=None, stream_dtype=jnp.bfloat16):
    """SelfAttention.forward (unmasked path).

    x:      (B, L, D) activations.
    w_proj: (H, D) nn.Linear(input_size, hidden_size) weight.
    b_proj: (H,)   projector bias.
    w_v:    (1, H) nn.Linear(hidden_size, 1, bias=False) weight.
    stream_dtype: dtype used to stream x / w_proj (bf16 by default to halve
        HBM traffic); None keeps x.dtype (exact path).
    Returns (B, D) pooled output in x.dtype.
    """
    B, L, D = x.shape
    H = w_proj.shape[0]
    out_dtype = x.dtype

    sdt = jnp.dtype(stream_dtype) if stream_dtype is not None else jnp.dtype(x.dtype)
    xs = x.astype(sdt)
    wp_t = jnp.transpose(w_proj).astype(sdt)              # (D, H) row-major MXU
    bp = jnp.reshape(b_proj, (1, H)).astype(jnp.float32)
    vw = jnp.reshape(w_v, (1, H)).astype(jnp.float32)

    vmem_limit, budget = _vmem_budgets()
    l_chunk = _pick_l_chunk(L)
    if tb is None:
        tb = _pick_batch_block(B, L, D, H, sdt.itemsize, out_dtype.itemsize,
                               l_chunk, budget)
    assert B % tb == 0, f"batch block tb={tb} must divide B={B}"
    assert tb == B or tb % 8 == 0, "tb must be a multiple of 8 (or the full batch)"
    grid = B // tb

    kernel = functools.partial(self_attention_kernel, l_chunk=l_chunk,
                               fold_mxu=not _dot3d_supported())

    cost = pl.CostEstimate(
        flops=2 * B * L * D * H + 2 * B * L * H + 3 * B * L * D,
        transcendentals=B * L * H + B * L,                     # tanh + exp
        bytes_accessed=(B * L * D + D * H) * sdt.itemsize
        + 2 * H * 4 + B * D * out_dtype.itemsize,
    )

    return pl.pallas_call(
        kernel,
        out_shape=jax.ShapeDtypeStruct((B, D), out_dtype),
        grid_spec=pltpu.PrefetchScalarGridSpec(
            num_scalar_prefetch=0,
            grid=(grid,),
            in_specs=[
                pl.BlockSpec((tb, L, D), lambda i: (i, 0, 0)),   # x batch block
                pl.BlockSpec((D, H), lambda i: (0, 0)),          # projector W^T
                pl.BlockSpec((1, H), lambda i: (0, 0)),          # projector bias
                pl.BlockSpec((1, H), lambda i: (0, 0)),          # v weight row
            ],
            out_specs=pl.BlockSpec((tb, D), lambda i: (i, 0)),   # (TB, D) slab
        ),
        compiler_params=pltpu.CompilerParams(
            dimension_semantics=("parallel",),
            vmem_limit_bytes=int(vmem_limit),
        ),
        cost_estimate=cost,
    )(xs, wp_t, bp, vw)


# ----------------------------------------------------------------------------
# Self-test
# ----------------------------------------------------------------------------
if __name__ == "__main__":
    key = jax.random.PRNGKey(0)
    k1, k2, k3, k4, k5, k6, k7, k8 = jax.random.split(key, 8)

    def make_inputs(kx, kw, kb, kv, B, L, D, H):
        x = jax.random.normal(kx, (B, L, D), dtype=jnp.float32)
        w_proj = 0.1 * jax.random.normal(kw, (H, D), dtype=jnp.float32)
        b_proj = 0.1 * jax.random.normal(kb, (H,), dtype=jnp.float32)
        w_v = 0.1 * jax.random.normal(kv, (1, H), dtype=jnp.float32)
        return x, w_proj, b_proj, w_v

    def reference(x, w_proj, b_proj, w_v):
        hi = jax.lax.Precision.HIGHEST
        proj = jnp.tanh(jnp.einsum("bld,hd->blh", x, w_proj, precision=hi) + b_proj)
        scores = jnp.einsum("blh,oh->blo", proj, w_v, precision=hi)[..., 0]
        weights = jax.nn.softmax(scores, axis=1)
        return jnp.einsum("bl,bld->bd", weights, x, precision=hi)

    def check(out, ref, atol, rtol, name):
        err = float(jnp.max(jnp.abs(out - ref)))
        assert bool(jnp.allclose(out, ref, atol=atol, rtol=rtol)), (
            f"{name}: max abs err {err}")

    # --- Test 1: module-consistent small shapes, exact f32 streaming path.
    B, L, D, H = 8, 8, 32, 32
    x, w_proj, b_proj, w_v = make_inputs(k1, k2, k3, k4, B, L, D, H)
    ref = reference(x, w_proj, b_proj, w_v)
    out = jax.block_until_ready(
        self_attention(x, w_proj, b_proj, w_v, stream_dtype=None))
    assert out.shape == (B, D)
    check(out, ref, 2e-3, 2e-3, "f32 path")

    # --- Test 2: same inputs through the default bf16-streaming fast path.
    out_bf16 = jax.block_until_ready(self_attention(x, w_proj, b_proj, w_v))
    check(out_bf16, ref, 2e-2, 2e-2, "bf16 path")

    # --- Test 3: longer sequence -> exercises the chunked weighted sum and a
    # multi-step ("parallel") grid.
    B2, L2, D2, H2 = 16, 1024, 128, 64
    x2, w2, b2, v2 = make_inputs(k5, k6, k7, k8, B2, L2, D2, H2)
    out2 = jax.block_until_ready(self_attention(x2, w2, b2, v2))
    assert out2.shape == (B2, D2)
    check(out2, reference(x2, w2, b2, v2), 2e-2, 2e-2, "long-seq path")

    print("KERNEL_OK")
</pallas_src>

<mosaic_0001>
module attributes {stable_mosaic.version = 11 : i64} {
  func.func @probe(%arg0: memref<8x8x32xbf16, #tpu.memory_space<vmem>>, %arg1: memref<32x32xbf16, #tpu.memory_space<vmem>>, %arg2: memref<8x8x32xf32, #tpu.memory_space<vmem>>) attributes {dimension_semantics = [], scalar_prefetch = 0 : i64, scratch_operands = 0 : i64, tpu.core_type = #tpu.core_type<tc>} {
    %c0 = arith.constant 0 : index
    %c0_0 = arith.constant 0 : index
    %c0_1 = arith.constant 0 : index
    %0 = vector.load %arg0[%c0, %c0_0, %c0_1] : memref<8x8x32xbf16, #tpu.memory_space<vmem>>, vector<8x8x32xbf16>
    %c0_2 = arith.constant 0 : index
    %c0_3 = arith.constant 0 : index
    %1 = vector.load %arg1[%c0_2, %c0_3] : memref<32x32xbf16, #tpu.memory_space<vmem>>, vector<32x32xbf16>
    %cst = arith.constant dense<0.000000e+00> : vector<8x8x32xf32>
    %2 = tpu.matmul %0, %1, %cst {dimension_numbers = #tpu.dot_dimension_numbers<[2], [0], [0, 1], [1], [0, 0, 0, 1, 1, 1], [], []>} : vector<8x8x32xbf16>, vector<32x32xbf16>, vector<8x8x32xf32> -> vector<8x8x32xf32>
    %c0_4 = arith.constant 0 : index
    %c0_5 = arith.constant 0 : index
    %c0_6 = arith.constant 0 : index
    %3 = vector.load %arg2[%c0_4, %c0_5, %c0_6] : memref<8x8x32xf32, #tpu.memory_space<vmem>>, vector<8x8x32xf32>
    tpu.vector_store %arg2[%c0_4, %c0_5, %c0_6], %2 {strides = array<i32>} : memref<8x8x32xf32, #tpu.memory_space<vmem>>, vector<8x8x32xf32>,
    return
  }
}

module attributes {stable_mosaic.version = 11 : i64} {
  func.func @self_attention_kernel(%arg0: i32, %arg1: memref<8x8x32xf32, #tpu.memory_space<vmem>>, %arg2: memref<32x32xf32, #tpu.memory_space<vmem>>, %arg3: memref<1x32xf32, #tpu.memory_space<vmem>>, %arg4: memref<1x32xf32, #tpu.memory_space<vmem>>, %arg5: memref<8x32xf32, #tpu.memory_space<vmem>>) attributes {dimension_semantics = [#tpu.dimension_semantics<parallel>], iteration_bounds = array<i64: 1>, scalar_prefetch = 0 : i64, scratch_operands = 0 : i64, tpu.core_type = #tpu.core_type<tc>, window_params = [{transform_indices = @transform_0, window_bounds = array<i64: 8, 8, 32>}, {pipeline_mode = #tpu.pipeline_mode<synchronous>, transform_indices = @transform_1, window_bounds = array<i64: 32, 32>}, {pipeline_mode = #tpu.pipeline_mode<synchronous>, transform_indices = @transform_2, window_bounds = array<i64: 1, 32>}, {pipeline_mode = #tpu.pipeline_mode<synchronous>, transform_indices = @transform_3, window_bounds = array<i64: 1, 32>}, {transform_indices = @transform_4, window_bounds = array<i64: 8, 32>}]} {
    %c0 = arith.constant 0 : index
    %c0_0 = arith.constant 0 : index
    %0 = vector.load %arg2[%c0, %c0_0] : memref<32x32xf32, #tpu.memory_space<vmem>>, vector<32x32xf32>
    %c0_1 = arith.constant 0 : index
    %c0_2 = arith.constant 0 : index
    %1 = vector.load %arg3[%c0_1, %c0_2] : memref<1x32xf32, #tpu.memory_space<vmem>>, vector<1x32xf32>
    %c0_3 = arith.constant 0 : index
    %c0_4 = arith.constant 0 : index
    %2 = vector.load %arg4[%c0_3, %c0_4] : memref<1x32xf32, #tpu.memory_space<vmem>>, vector<1x32xf32>
    %c0_5 = arith.constant 0 : index
    %c0_6 = arith.constant 0 : index
    %c0_7 = arith.constant 0 : index
    %3 = vector.load %arg1[%c0_5, %c0_6, %c0_7] : memref<8x8x32xf32, #tpu.memory_space<vmem>>, vector<8x8x32xf32>
    %4 = vector.shape_cast %3 : vector<8x8x32xf32> to vector<64x32xf32>
    %cst = arith.constant dense<0.000000e+00> : vector<64x32xf32>
    %5 = tpu.matmul %4, %0, %cst {dimension_numbers = #tpu.dot_dimension_numbers<[1], [0], [0], [1], [0, 0, 1, 1], [], []>} : vector<64x32xf32>, vector<32x32xf32>, vector<64x32xf32> -> vector<64x32xf32>
    %6 = vector.broadcast %1 : vector<1x32xf32> to vector<64x32xf32>
    %7 = arith.addf %5, %6 : vector<64x32xf32>
    %8 = math.tanh %7 : vector<64x32xf32>
    %9 = vector.broadcast %2 : vector<1x32xf32> to vector<64x32xf32>
    %10 = arith.mulf %8, %9 : vector<64x32xf32>
    %cst_8 = arith.constant dense<0.000000e+00> : vector<64xf32>
    %11 = vector.multi_reduction <add>, %10, %cst_8 [1] : vector<64x32xf32> to vector<64xf32>
    %12 = vector.shape_cast %11 : vector<64xf32> to vector<64x1xf32>
    %13 = vector.shape_cast %12 : vector<64x1xf32> to vector<8x8x1xf32>
    %cst_9 = arith.constant dense<0xFF800000> : vector<8x1xf32>
    %14 = vector.multi_reduction <maximumf>, %13, %cst_9 [1] : vector<8x8x1xf32> to vector<8x1xf32>
    %15 = vector.shape_cast %14 : vector<8x1xf32> to vector<8x1x1xf32>
    %16 = vector.broadcast %15 : vector<8x1x1xf32> to vector<8x8x1xf32>
    %17 = arith.subf %13, %16 : vector<8x8x1xf32>
    %18 = math.exp %17 : vector<8x8x1xf32>
    %cst_10 = arith.constant dense<0.000000e+00> : vector<8x1xf32>
    %19 = vector.multi_reduction <add>, %18, %cst_10 [1] : vector<8x8x1xf32> to vector<8x1xf32>
    %20 = vector.shape_cast %19 : vector<8x1xf32> to vector<8x1x1xf32>
    %cst_11 = arith.constant 1.000000e+00 : f32
    %21 = vector.broadcast %cst_11 : f32 to vector<8x1x1xf32>
    %22 = arith.divf %21, %20 : vector<8x1x1xf32>
    %23 = vector.broadcast %22 : vector<8x1x1xf32> to vector<8x8x1xf32>
    %24 = arith.mulf %18, %23 : vector<8x8x1xf32>
    %cst_12 = arith.constant 0.000000e+00 : f32
    %25 = vector.broadcast %cst_12 : f32 to vector<8x32xf32>
    %c0_13 = arith.constant 0 : index
    %c0_14 = arith.constant 0 : index
    %c0_15 = arith.constant 0 : index
    %26 = vector.load %arg1[%c0_13, %c0_14, %c0_15] : memref<8x8x32xf32, #tpu.memory_space<vmem>>, vector<8x8x32xf32>
    %27 = vector.broadcast %24 : vector<8x8x1xf32> to vector<8x8x32xf32>
    %28 = arith.mulf %27, %26 : vector<8x8x32xf32>
    %cst_16 = arith.constant dense<0.000000e+00> : vector<8x32xf32>
    %29 = vector.multi_reduction <add>, %28, %cst_16 [1] : vector<8x8x32xf32> to vector<8x32xf32>
    %30 = arith.addf %25, %29 : vector<8x32xf32>
    %c0_17 = arith.constant 0 : index
    %c0_18 = arith.constant 0 : index
    %31 = vector.load %arg5[%c0_17, %c0_18] : memref<8x32xf32, #tpu.memory_space<vmem>>, vector<8x32xf32>
    tpu.vector_store %arg5[%c0_17, %c0_18], %30 {strides = array<i32>} : memref<8x32xf32, #tpu.memory_space<vmem>>, vector<8x32xf32>,
    return
  }
  func.func @transform_0(%arg0: i32) -> (i32, i32, i32) {
    %c0_i32 = arith.constant 0 : i32
    %c0_i32_0 = arith.constant 0 : i32
    %c0_i32_1 = arith.constant 0 : i32
    return %arg0, %c0_i32, %c0_i32_0 : i32, i32, i32
  }
  func.func @transform_1(%arg0: i32) -> (i32, i32) {
    %c0_i32 = arith.constant 0 : i32
    %c0_i32_0 = arith.constant 0 : i32
    %c0_i32_1 = arith.constant 0 : i32
    return %c0_i32, %c0_i32_0 : i32, i32
  }
  func.func @transform_2(%arg0: i32) -> (i32, i32) {
    %c0_i32 = arith.constant 0 : i32
    %c0_i32_0 = arith.constant 0 : i32
    %c0_i32_1 = arith.constant 0 : i32
    return %c0_i32, %c0_i32_0 : i32, i32
  }
  func.func @transform_3(%arg0: i32) -> (i32, i32) {
    %c0_i32 = arith.constant 0 : i32
    %c0_i32_0 = arith.constant 0 : i32
    %c0_i32_1 = arith.constant 0 : i32
    return %c0_i32, %c0_i32_0 : i32, i32
  }
  func.func @transform_4(%arg0: i32) -> (i32, i32) {
    %c0_i32 = arith.constant 0 : i32
    %c0_i32_0 = arith.constant 0 : i32
    return %arg0, %c0_i32 : i32, i32
  }
}

</mosaic_0001>

<llo_original>
// kernel: tpu_custom_call.1
$region0: #{tpu_custom_call.1}
  #allocation0 [shape = 'u32[]', space=smem, size = 0x4, offset = 0x4, fixed_abs, tag = 'smem constant byte address 0x4 - core index']
  #allocation1 [shape = 'u32[144,128]{1,0:T(1,128)}', space=vmem, size = 0x12000, scoped, tag = 'internal scratch']
  %s0 = inlined_call_operand.hbm [shape: bf16[8,8,32], index: 0, kind: input, shape index: {}]
  %s1 = inlined_call_operand.hbm [shape: bf16[32,32], index: 1, kind: input, shape index: {}]
  %s2 = inlined_call_operand.hbm [shape: f32[8,8,32], index: 2, kind: output, shape index: {}]
  %s3 = sld [smem:[#allocation0]]
  $region26: #{tpu_custom_call.1} parent=0
    _
  %s5 = ssub.s32 1, %s3
  %s6 = scalar_select 0, %s5, %s3
  $region1: #{tpu_custom_call.1} parent=0
    #allocation2 [shape = 'u8[16384]{0}', space=vmem, size = 0x4000, scoped, tag = 'input window, operand 0, single buffered']
    #allocation3 [shape = 's32[1]{0}', space=sflag, size = 0x4, scoped, tag = 'scoped memory for tpu_custom_call.1']
    #allocation4 [shape = 's32[1]{0}', space=sflag, size = 0x4, scoped, tag = 'scoped memory for tpu_custom_call.1']
    #allocation5 [shape = 'u8[8192]{0}', space=vmem, size = 0x2000, scoped, tag = 'input window, operand 1, single buffered']
    #allocation6 [shape = 's32[1]{0}', space=sflag, size = 0x4, scoped, tag = 'scoped memory for tpu_custom_call.1']
    #allocation7 [shape = 'u8[32768]{0}', space=vmem, size = 0x8000, scoped, tag = 'output window, operand 0, single buffered']
    %7 = vsyncpa [#allocation3], 0
    %8 = vsyncpa [#allocation6], 0
    %9 = vsyncpa [#allocation4], 0
    // Predicated region
    $region2: #{tpu_custom_call.1} parent=1 // pred_check
      _
    $region3: #{tpu_custom_call.1} parent=1 // pred_check_branch
      %11 = sbr.rel (0) target = $region5
    $region4: #{tpu_custom_call.1} parent=1 // pred_region
      %s13 = ssub.s32 512, 512
      %14 = vsyncadd [#allocation3], %s13
      %s15 = sshll.u32 [#allocation2], 4
      %s16 = int_to_ptr.vmem [resolvable:$true] %s15
      %21 = dma.hbm_to_vmem [thread:$0]  %s0, 512, %s16, [#allocation3], 64, 64, 4
    $region5: #{tpu_custom_call.1} parent=1 // pred_fallthru
      _
    // Predicated region
    $region6: #{tpu_custom_call.1} parent=1 // pred_check
      _
    $region7: #{tpu_custom_call.1} parent=1 // pred_check_branch
      %23 = sbr.rel (0) target = $region9
    $region8: #{tpu_custom_call.1} parent=1 // pred_region
      %s25 = ssub.s32 256, 256
      %26 = vsyncadd [#allocation6], %s25
      %s27 = sshll.u32 [#allocation5], 4
      %s28 = int_to_ptr.vmem [resolvable:$true] %s27
      %33 = dma.hbm_to_vmem [thread:$0]  %s1, 256, %s28, [#allocation6], 64, 64, 4
    $region9: #{tpu_custom_call.1} parent=1 // pred_fallthru
      _
    // Predicated region
    $region10: #{tpu_custom_call.1} parent=1 // pred_check
      _
    $region11: #{tpu_custom_call.1} parent=1 // pred_check_branch
      %35 = sbr.rel (0) target = $region13
    $region12: #{tpu_custom_call.1} parent=1 // pred_region
      %36 = dma.done [#allocation3], 512
    $region13: #{tpu_custom_call.1} parent=1 // pred_fallthru
      _
    // Predicated region
    $region14: #{tpu_custom_call.1} parent=1 // pred_check
      _
    $region15: #{tpu_custom_call.1} parent=1 // pred_check_branch
      %38 = sbr.rel (0) target = $region17
    $region16: #{tpu_custom_call.1} parent=1 // pred_region
      %39 = dma.done [#allocation6], 256
    $region17: #{tpu_custom_call.1} parent=1 // pred_fallthru
      _
    %v41 = vld [vmem:[#allocation2] sm:$0xf]
    %v42 = vld [vmem:[#allocation2 + $0x4] sm:$0xf]
    %v43 = vld [vmem:[#allocation2 + $0x8] sm:$0xf]
    %v44 = vld [vmem:[#allocation2 + $0xc] sm:$0xf]
    %v45 = vld [vmem:[#allocation2 + $0x10] sm:$0xf]
    %v46 = vld [vmem:[#allocation2 + $0x14] sm:$0xf]
    %v47 = vld [vmem:[#allocation2 + $0x18] sm:$0xf]
    %v48 = vld [vmem:[#allocation2 + $0x1c] sm:$0xf]
    %v49 = vld [vmem:[#allocation5] sm:$0xf]
    %v50 = vld [vmem:[#allocation5 + $0x4] sm:$0xf]
    %v51 = vld [vmem:[#allocation5 + $0x8] sm:$0xf]
    %v52 = vld [vmem:[#allocation5 + $0xc] sm:$0xf]
    %v61 = vunpack.c.l.b16 %v41
    %v62 = vunpack.c.l.b16 %v42
    %v63 = vunpack.c.l.b16 %v43
    %v64 = vunpack.c.l.b16 %v44
    %v65 = vunpack.c.l.b16 %v45
    %v66 = vunpack.c.l.b16 %v46
    %v67 = vunpack.c.l.b16 %v47
    %v68 = vunpack.c.l.b16 %v48
    %v69 = vpack.c.b16 %v62, %v61
    %v70 = vpack.c.b16 %v64, %v63
    %v71 = vpack.c.b16 %v66, %v65
    %v72 = vpack.c.b16 %v68, %v67
    %v77 = vunpack.c.l.b16 %v49
    %v78 = vunpack.c.l.b16 %v50
    %v79 = vunpack.c.l.b16 %v51
    %v80 = vunpack.c.l.b16 %v52
    %v81 = vpack.c.b16 %v78, %v77
    %v82 = vpack.c.b16 %v80, %v79
    %vm85 = vcmask 261120
    %v87 = vsel %vm85, %v69, 0
    %v90 = vsel %vm85, %v70, 0
    %v93 = vsel %vm85, %v71, 0
    %v96 = vsel %vm85, %v72, 0
    %98 = vmatprep.subr.bf16.mxu0 0
    %99 = vmatpush1.bf16.msra.mxu0 %v81
    %100 = vmatprep.subr.bf16.mxu0 0
    %101 = vmatpush1.bf16.msra.mxu0 %v82
    %102 = vmatprep.subr.bf16.mxu0 0
    %103 = vmatpush1.bf16.msra.mxu0 0
    %104 = vmatprep.subr.bf16.mxu0 0
    %105 = vmatpush1.bf16.msra.mxu0 0
    %106 = vmatprep.subr.bf16.mxu0 0
    %107 = vmatpush1.bf16.msra.mxu0 0
    %108 = vmatprep.subr.bf16.mxu0 0
    %109 = vmatpush1.bf16.msra.mxu0 0
    %110 = vmatprep.subr.bf16.mxu0 0
    %111 = vmatpush1.bf16.msra.mxu0 0
    %112 = vmatprep.subr.bf16.mxu0 0
    %113 = vmatpush1.bf16.msra.mxu0 0
    %114 = vmatprep.subr.bf16.mxu0 0
    %115 = vmatpush1.bf16.msra.mxu0 0
    %116 = vmatprep.subr.bf16.mxu0 0
    %117 = vmatpush1.bf16.msra.mxu0 0
    %118 = vmatprep.subr.bf16.mxu0 0
    %119 = vmatpush1.bf16.msra.mxu0 0
    %120 = vmatprep.subr.bf16.mxu0 0
    %121 = vmatpush1.bf16.msra.mxu0 0
    %122 = vmatprep.subr.bf16.mxu0 0
    %123 = vmatpush1.bf16.msra.mxu0 0
    %124 = vmatprep.subr.bf16.mxu0 0
    %125 = vmatpush1.bf16.msra.mxu0 0
    %126 = vmatprep.subr.bf16.mxu0 0
    %127 = vmatpush1.bf16.msra.mxu0 0
    %128 = vmatprep.subr.bf16.mxu0 0
    %129 = vmatpush1.bf16.msra.mxu0 0
    %130 = vmatprep.mubr.bf16.mxu0 0
    %131 = vmatmul.mubr.bf16.gmra.mrb[0].mxu0 %v87
    %v132 = vpop.f32.mrb[0].mxu0
    %v133 = vadd.f32 0.0, %v132
    %v134 = vpop.f32.mrb[0].mxu0
    %v135 = vpop.f32.mrb[0].mxu0
    %v136 = vadd.f32 0.0, %v135
    %v137 = vpop.f32.mrb[0].mxu0
    %138 = vmatprep.mubr.bf16.mxu0 0
    %139 = vmatmul.mubr.bf16.gmra.mrb[0].mxu0 %v90
    %v140 = vpop.f32.mrb[0].mxu0
    %v141 = vadd.f32 0.0, %v140
    %v142 = vpop.f32.mrb[0].mxu0
    %v143 = vpop.f32.mrb[0].mxu0
    %v144 = vadd.f32 0.0, %v143
    %v145 = vpop.f32.mrb[0].mxu0
    %146 = vmatprep.mubr.bf16.mxu0 0
    %147 = vmatmul.mubr.bf16.gmra.mrb[0].mxu0 %v93
    %v148 = vpop.f32.mrb[0].mxu0
    %v149 = vadd.f32 0.0, %v148
    %v150 = vpop.f32.mrb[0].mxu0
    %v151 = vpop.f32.mrb[0].mxu0
    %v152 = vadd.f32 0.0, %v151
    %v153 = vpop.f32.mrb[0].mxu0
    %154 = vmatprep.mubr.bf16.mxu0 0
    %155 = vmatmul.mubr.bf16.gmra.mrb[0].mxu0 %v96
    %v156 = vpop.f32.mrb[0].mxu0
    %v157 = vadd.f32 0.0, %v156
    %v158 = vpop.f32.mrb[0].mxu0
    %v159 = vpop.f32.mrb[0].mxu0
    %v160 = vadd.f32 0.0, %v159
    %v161 = vpop.f32.mrb[0].mxu0
    %162 = vdwg.mxu0
    %163 = vst.msk [vmem:[#allocation7] sm:$0xff] %vm85, %v133
    %164 = vst.msk [vmem:[#allocation7 + $0x8] sm:$0xff] %vm85, %v136
    %165 = vst.msk [vmem:[#allocation7 + $0x10] sm:$0xff] %vm85, %v141
    %166 = vst.msk [vmem:[#allocation7 + $0x18] sm:$0xff] %vm85, %v144
    %167 = vst.msk [vmem:[#allocation7 + $0x20] sm:$0xff] %vm85, %v149
    %168 = vst.msk [vmem:[#allocation7 + $0x28] sm:$0xff] %vm85, %v152
    %169 = vst.msk [vmem:[#allocation7 + $0x30] sm:$0xff] %vm85, %v157
    %170 = vst.msk [vmem:[#allocation7 + $0x38] sm:$0xff] %vm85, %v160
    // Predicated region
    $region18: #{tpu_custom_call.1} parent=1 // pred_check
      _
    $region19: #{tpu_custom_call.1} parent=1 // pred_check_branch
      %172 = sbr.rel (0) target = $region21
    $region20: #{tpu_custom_call.1} parent=1 // pred_region
      %s174 = ssub.s32 1024, 1024
      %175 = vsyncadd [#allocation4], %s174
      %s176 = sshll.u32 [#allocation7], 4
      %s177 = int_to_ptr.vmem [resolvable:$true] %s176
      %182 = dma.vmem_to_hbm [thread:$0]  %s177, 1024, %s2, [#allocation4], 128, 128, 8
    $region21: #{tpu_custom_call.1} parent=1 // pred_fallthru
      _
    // Predicated region
    $region22: #{tpu_custom_call.1} parent=1 // pred_check
      _
    $region23: #{tpu_custom_call.1} parent=1 // pred_check_branch
      %184 = sbr.rel (0) target = $region25
    $region24: #{tpu_custom_call.1} parent=1 // pred_region
      %185 = dma.done [#allocation4], 1024
    $region25: #{tpu_custom_call.1} parent=1 // pred_fallthru
      _
    %186 = vsyncpa [#allocation3], 1
    %187 = vsyncpa [#allocation6], 1
    %188 = vsyncpa [#allocation4], 1

// kernel: tpu_custom_call.1
$region0: #{tpu_custom_call.1}
  #allocation0 [shape = 'u32[]', space=smem, size = 0x4, offset = 0x4, fixed_abs, tag = 'smem constant byte address 0x4 - core index']
  #allocation1 [shape = 'u32[144,128]{1,0:T(1,128)}', space=vmem, size = 0x12000, scoped, tag = 'internal scratch']
  %s0 = inlined_call_operand.hbm [shape: f32[8,8,32], index: 0, kind: input, shape index: {}]
  %s1 = inlined_call_operand.hbm [shape: f32[32,32], index: 1, kind: input, shape index: {}]
  %s2 = inlined_call_operand.vmem [shape: f32[1,32], index: 2, kind: input, shape index: {}]
  %s3 = inlined_call_operand.vmem [shape: f32[1,32], index: 3, kind: input, shape index: {}]
  %s4 = inlined_call_operand.hbm [shape: f32[8,32], index: 4, kind: output, shape index: {}]
  %s5 = sld [smem:[#allocation0]]
  $region34: #{tpu_custom_call.1} parent=0
    _
  %s7 = ssub.s32 1, %s5
  %s8 = scalar_select 0, %s7, %s5
  $region1: #{tpu_custom_call.1} parent=0
    #allocation2 [shape = 'u8[32768]{0}', space=vmem, size = 0x8000, scoped, tag = 'input window, operand 0, single buffered']
    #allocation3 [shape = 's32[1]{0}', space=sflag, size = 0x4, scoped, tag = 'scoped memory for tpu_custom_call.1']
    #allocation4 [shape = 's32[1]{0}', space=sflag, size = 0x4, scoped, tag = 'scoped memory for tpu_custom_call.1']
    #allocation5 [shape = 'u8[16384]{0}', space=vmem, size = 0x4000, scoped, tag = 'input window, operand 1, single buffered']
    #allocation6 [shape = 's32[1]{0}', space=sflag, size = 0x4, scoped, tag = 'scoped memory for tpu_custom_call.1']
    #allocation7 [shape = 'u8[4096]{0}', space=vmem, size = 0x1000, scoped, tag = 'output window, operand 0, single buffered']
    %9 = vsyncpa [#allocation3], 0
    %10 = vsyncpa [#allocation6], 0
    %11 = vsyncpa [#allocation4], 0
    // Predicated region
    $region2: #{tpu_custom_call.1} parent=1 // pred_check
      _
    $region3: #{tpu_custom_call.1} parent=1 // pred_check_branch
      %13 = sbr.rel (0) target = $region5
    $region4: #{tpu_custom_call.1} parent=1 // pred_region
      %s15 = ssub.s32 1024, 1024
      %16 = vsyncadd [#allocation3], %s15
      %s17 = sshll.u32 [#allocation2], 4
      %s18 = int_to_ptr.vmem [resolvable:$true] %s17
      %23 = dma.hbm_to_vmem [thread:$0]  %s0, 1024, %s18, [#allocation3], 128, 128, 8
    $region5: #{tpu_custom_call.1} parent=1 // pred_fallthru
      _
    // Predicated region
    $region6: #{tpu_custom_call.1} parent=1 // pred_check
      _
    $region7: #{tpu_custom_call.1} parent=1 // pred_check_branch
      %25 = sbr.rel (0) target = $region9
    $region8: #{tpu_custom_call.1} parent=1 // pred_region
      %s27 = ssub.s32 512, 512
      %28 = vsyncadd [#allocation6], %s27
      %s29 = sshll.u32 [#allocation5], 4
      %s30 = int_to_ptr.vmem [resolvable:$true] %s29
      %35 = dma.hbm_to_vmem [thread:$0]  %s1, 512, %s30, [#allocation6], 128, 128, 8
    $region9: #{tpu_custom_call.1} parent=1 // pred_fallthru
      _
    // Predicated region
    $region10: #{tpu_custom_call.1} parent=1 // pred_check
      _
    $region11: #{tpu_custom_call.1} parent=1 // pred_check_branch
      %37 = sbr.rel (0) target = $region13
    $region12: #{tpu_custom_call.1} parent=1 // pred_region
      _
    $region13: #{tpu_custom_call.1} parent=1 // pred_fallthru
      _
    // Predicated region
    $region14: #{tpu_custom_call.1} parent=1 // pred_check
      _
    $region15: #{tpu_custom_call.1} parent=1 // pred_check_branch
      %39 = sbr.rel (0) target = $region17
    $region16: #{tpu_custom_call.1} parent=1 // pred_region
      _
    $region17: #{tpu_custom_call.1} parent=1 // pred_fallthru
      _
    // Predicated region
    $region18: #{tpu_custom_call.1} parent=1 // pred_check
      _
    $region19: #{tpu_custom_call.1} parent=1 // pred_check_branch
      %41 = sbr.rel (0) target = $region21
    $region20: #{tpu_custom_call.1} parent=1 // pred_region
      %42 = dma.done [#allocation3], 1024
    $region21: #{tpu_custom_call.1} parent=1 // pred_fallthru
      _
    // Predicated region
    $region22: #{tpu_custom_call.1} parent=1 // pred_check
      _
    $region23: #{tpu_custom_call.1} parent=1 // pred_check_branch
      %44 = sbr.rel (0) target = $region25
    $region24: #{tpu_custom_call.1} parent=1 // pred_region
      %45 = dma.done [#allocation6], 512
    $region25: #{tpu_custom_call.1} parent=1 // pred_fallthru
      _
    %v46 = vld [vmem:[#allocation5] sm:$0xff]
    %v47 = vld [vmem:[#allocation5 + $0x8] sm:$0xff]
    %v48 = vld [vmem:[#allocation5 + $0x10] sm:$0xff]
    %v49 = vld [vmem:[#allocation5 + $0x18] sm:$0xff]
    %v50 = vld [vmem:[%s2] sm:$0x1]
    %v51 = vld [vmem:[%s3] sm:$0x1]
    %v52 = vld [vmem:[#allocation2] sm:$0xff]
    %v53 = vld [vmem:[#allocation2 + $0x8] sm:$0xff]
    %v54 = vld [vmem:[#allocation2 + $0x10] sm:$0xff]
    %v55 = vld [vmem:[#allocation2 + $0x18] sm:$0xff]
    %v56 = vld [vmem:[#allocation2 + $0x20] sm:$0xff]
    %v57 = vld [vmem:[#allocation2 + $0x28] sm:$0xff]
    %v58 = vld [vmem:[#allocation2 + $0x30] sm:$0xff]
    %v59 = vld [vmem:[#allocation2 + $0x38] sm:$0xff]
    %v61 = vlaneseq
    %v62 = vshrl.u32 %v61, 7
    %v63 = vsub.s32 0, %v62
    %v64 = vrot.slane %v50, %v63
    %vm66 = vcmask 261120
    %v68 = vsel %vm66, %v52, 0
    %v71 = vsel %vm66, %v53, 0
    %v74 = vsel %vm66, %v54, 0
    %v77 = vsel %vm66, %v55, 0
    %v80 = vsel %vm66, %v56, 0
    %v83 = vsel %vm66, %v57, 0
    %v86 = vsel %vm66, %v58, 0
    %v89 = vsel %vm66, %v59, 0
    %91 = vmatprep.subr.mxu0 0.0
    %92 = vmatpush1.msra.mxu0 %v46
    %93 = vmatprep.subr.mxu0 0.0
    %94 = vmatpush1.msra.mxu0 %v47
    %95 = vmatprep.subr.mxu0 0.0
    %96 = vmatpush1.msra.mxu0 %v48
    %97 = vmatprep.subr.mxu0 0.0
    %98 = vmatpush1.msra.mxu0 %v49
    %99 = vmatprep.subr.mxu0 0.0
    %100 = vmatpush1.msra.mxu0 0.0
    %101 = vmatprep.subr.mxu0 0.0
    %102 = vmatpush1.msra.mxu0 0.0
    %103 = vmatprep.subr.mxu0 0.0
    %104 = vmatpush1.msra.mxu0 0.0
    %105 = vmatprep.subr.mxu0 0.0
    %106 = vmatpush1.msra.mxu0 0.0
    %107 = vmatprep.subr.mxu0 0.0
    %108 = vmatpush1.msra.mxu0 0.0
    %109 = vmatprep.subr.mxu0 0.0
    %110 = vmatpush1.msra.mxu0 0.0
    %111 = vmatprep.subr.mxu0 0.0
    %112 = vmatpush1.msra.mxu0 0.0
    %113 = vmatprep.subr.mxu0 0.0
    %114 = vmatpush1.msra.mxu0 0.0
    %115 = vmatprep.subr.mxu0 0.0
    %116 = vmatpush1.msra.mxu0 0.0
    %117 = vmatprep.subr.mxu0 0.0
    %118 = vmatpush1.msra.mxu0 0.0
    %119 = vmatprep.subr.mxu0 0.0
    %120 = vmatpush1.msra.mxu0 0.0
    %121 = vmatprep.subr.mxu0 0.0
    %122 = vmatpush1.msra.mxu0 0.0
    %123 = vmatprep.subr.mxu0 0.0
    %124 = vmatpush1.msra.mxu0 0.0
    %125 = vmatprep.subr.mxu0 0.0
    %126 = vmatpush1.msra.mxu0 0.0
    %127 = vmatprep.subr.mxu0 0.0
    %128 = vmatpush1.msra.mxu0 0.0
    %129 = vmatprep.subr.mxu0 0.0
    %130 = vmatpush1.msra.mxu0 0.0
    %131 = vmatprep.subr.mxu0 0.0
    %132 = vmatpush1.msra.mxu0 0.0
    %133 = vmatprep.subr.mxu0 0.0
    %134 = vmatpush1.msra.mxu0 0.0
    %135 = vmatprep.subr.mxu0 0.0
    %136 = vmatpush1.msra.mxu0 0.0
    %137 = vmatprep.subr.mxu0 0.0
    %138 = vmatpush1.msra.mxu0 0.0
    %139 = vmatprep.subr.mxu0 0.0
    %140 = vmatpush1.msra.mxu0 0.0
    %141 = vmatprep.subr.mxu0 0.0
    %142 = vmatpush1.msra.mxu0 0.0
    %143 = vmatprep.subr.mxu0 0.0
    %144 = vmatpush1.msra.mxu0 0.0
    %145 = vmatprep.subr.mxu0 0.0
    %146 = vmatpush1.msra.mxu0 0.0
    %147 = vmatprep.subr.mxu0 0.0
    %148 = vmatpush1.msra.mxu0 0.0
    %149 = vmatprep.subr.mxu0 0.0
    %150 = vmatpush1.msra.mxu0 0.0
    %151 = vmatprep.subr.mxu0 0.0
    %152 = vmatpush1.msra.mxu0 0.0
    %153 = vmatprep.subr.mxu0 0.0
    %154 = vmatpush1.msra.mxu0 0.0
    %155 = vmatprep.mubr.f32.mxu0 0.0
    %156 = vmatmul.mubr.f32.gmra.mrb[0].mxu0 %v68
    %v157 = vpop.f32.mrb[0].mxu0
    %v158 = vadd.f32 %v64, %v157
    %v159 = vpop.f32.mrb[0].mxu0
    %160 = vmatprep.mubr.f32.mxu0 0.0
    %161 = vmatmul.mubr.f32.gmra.mrb[0].mxu0 %v71
    %v162 = vpop.f32.mrb[0].mxu0
    %v163 = vadd.f32 %v64, %v162
    %v164 = vpop.f32.mrb[0].mxu0
    %165 = vmatprep.mubr.f32.mxu0 0.0
    %166 = vmatmul.mubr.f32.gmra.mrb[0].mxu0 %v74
    %v167 = vpop.f32.mrb[0].mxu0
    %v168 = vadd.f32 %v64, %v167
    %v169 = vpop.f32.mrb[0].mxu0
    %170 = vmatprep.mubr.f32.mxu0 0.0
    %171 = vmatmul.mubr.f32.gmra.mrb[0].mxu0 %v77
    %v172 = vpop.f32.mrb[0].mxu0
    %v173 = vadd.f32 %v64, %v172
    %v174 = vpop.f32.mrb[0].mxu0
    %175 = vmatprep.mubr.f32.mxu0 0.0
    %176 = vmatmul.mubr.f32.gmra.mrb[0].mxu0 %v80
    %v177 = vpop.f32.mrb[0].mxu0
    %v178 = vadd.f32 %v64, %v177
    %v179 = vpop.f32.mrb[0].mxu0
    %180 = vmatprep.mubr.f32.mxu0 0.0
    %181 = vmatmul.mubr.f32.gmra.mrb[0].mxu0 %v83
    %v182 = vpop.f32.mrb[0].mxu0
    %v183 = vadd.f32 %v64, %v182
    %v184 = vpop.f32.mrb[0].mxu0
    %185 = vmatprep.mubr.f32.mxu0 0.0
    %186 = vmatmul.mubr.f32.gmra.mrb[0].mxu0 %v86
    %v187 = vpop.f32.mrb[0].mxu0
    %v188 = vadd.f32 %v64, %v187
    %v189 = vpop.f32.mrb[0].mxu0
    %190 = vmatprep.mubr.f32.mxu0 0.0
    %191 = vmatmul.mubr.f32.gmra.mrb[0].mxu0 %v89
    %v192 = vpop.f32.mrb[0].mxu0
    %v193 = vadd.f32 %v64, %v192
    %v194 = vpop.f32.mrb[0].mxu0
    %195 = vdwg.mxu0
    %v196 = vtanh.pop %v158
    %v197 = vtanh.pop %v163
    %v198 = vtanh.pop %v168
    %v199 = vtanh.pop %v173
    %v200 = vtanh.pop %v178
    %v201 = vtanh.pop %v183
    %v202 = vtanh.pop %v188
    %v203 = vtanh.pop %v193
    %v205 = vlaneseq
    %v206 = vshrl.u32 %v205, 7
    %v207 = vsub.s32 0, %v206
    %v208 = vrot.slane %v51, %v207
    %v210 = vmul.f32 %v196, %v208
    %v211 = vmul.f32 %v197, %v208
    %v212 = vmul.f32 %v198, %v208
    %v213 = vmul.f32 %v199, %v208
    %v214 = vmul.f32 %v200, %v208
    %v215 = vmul.f32 %v201, %v208
    %v216 = vmul.f32 %v202, %v208
    %v217 = vmul.f32 %v203, %v208
    %v218 = vsel %vm66, %v210, 0.0
    %219 = vadd.xlane.f32.xlu0 %v218
    %v220 = vpop.xlane.xlu0 %219
    %v221 = vsel %vm66, %v211, 0.0
    %222 = vadd.xlane.f32.xlu0 %v221
    %v223 = vpop.xlane.xlu0 %222
    %v224 = vsel %vm66, %v212, 0.0
    %225 = vadd.xlane.f32.xlu0 %v224
    %v226 = vpop.xlane.xlu0 %225
    %v227 = vsel %vm66, %v213, 0.0
    %228 = vadd.xlane.f32.xlu0 %v227
    %v229 = vpop.xlane.xlu0 %228
    %v230 = vsel %vm66, %v214, 0.0
    %231 = vadd.xlane.f32.xlu0 %v230
    %v232 = vpop.xlane.xlu0 %231
    %v233 = vsel %vm66, %v215, 0.0
    %234 = vadd.xlane.f32.xlu0 %v233
    %v235 = vpop.xlane.xlu0 %234
    %v236 = vsel %vm66, %v216, 0.0
    %237 = vadd.xlane.f32.xlu0 %v236
    %v238 = vpop.xlane.xlu0 %237
    %v239 = vsel %vm66, %v217, 0.0
    %240 = vadd.xlane.f32.xlu0 %v239
    %v241 = vpop.xlane.xlu0 %240
    %v242 = vrot.slane %v220, 4
    %v243 = vmax.f32 %v220, %v242
    %v244 = vrot.slane %v243, 2
    %v245 = vmax.f32 %v243, %v244
    %v246 = vrot.slane %v245, 1
    %v247 = vmax.f32 %v245, %v246
    %v248 = vrot.slane %v223, 4
    %v249 = vmax.f32 %v223, %v248
    %v250 = vrot.slane %v249, 2
    %v251 = vmax.f32 %v249, %v250
    %v252 = vrot.slane %v251, 1
    %v253 = vmax.f32 %v251, %v252
    %v254 = vrot.slane %v226, 4
    %v255 = vmax.f32 %v226, %v254
    %v256 = vrot.slane %v255, 2
    %v257 = vmax.f32 %v255, %v256
    %v258 = vrot.slane %v257, 1
    %v259 = vmax.f32 %v257, %v258
    %v260 = vrot.slane %v229, 4
    %v261 = vmax.f32 %v229, %v260
    %v262 = vrot.slane %v261, 2
    %v263 = vmax.f32 %v261, %v262
    %v264 = vrot.slane %v263, 1
    %v265 = vmax.f32 %v263, %v264
    %v266 = vrot.slane %v232, 4
    %v267 = vmax.f32 %v232, %v266
    %v268 = vrot.slane %v267, 2
    %v269 = vmax.f32 %v267, %v268
    %v270 = vrot.slane %v269, 1
    %v271 = vmax.f32 %v269, %v270
    %v272 = vrot.slane %v235, 4
    %v273 = vmax.f32 %v235, %v272
    %v274 = vrot.slane %v273, 2
    %v275 = vmax.f32 %v273, %v274
    %v276 = vrot.slane %v275, 1
    %v277 = vmax.f32 %v275, %v276
    %v278 = vrot.slane %v238, 4
    %v279 = vmax.f32 %v238, %v278
    %v280 = vrot.slane %v279, 2
    %v281 = vmax.f32 %v279, %v280
    %v282 = vrot.slane %v281, 1
    %v283 = vmax.f32 %v281, %v282
    %v284 = vrot.slane %v241, 4
    %v285 = vmax.f32 %v241, %v284
    %v286 = vrot.slane %v285, 2
    %v287 = vmax.f32 %v285, %v286
    %v288 = vrot.slane %v287, 1
    %v289 = vmax.f32 %v287, %v288
    %v290 = vsub.f32 %v220, %v247
    %v291 = vsub.f32 %v223, %v253
    %v292 = vsub.f32 %v226, %v259
    %v293 = vsub.f32 %v229, %v265
    %v294 = vsub.f32 %v232, %v271
    %v295 = vsub.f32 %v235, %v277
    %v296 = vsub.f32 %v238, %v283
    %v297 = vsub.f32 %v241, %v289
    %v298 = vmul.f32 %v290, 1.442695
    %v299 = vpow.pop %v298
    %v300 = vmul.f32 %v291, 1.442695
    %v301 = vpow.pop %v300
    %v302 = vmul.f32 %v292, 1.442695
    %v303 = vpow.pop %v302
    %v304 = vmul.f32 %v293, 1.442695
    %v305 = vpow.pop %v304
    %v306 = vmul.f32 %v294, 1.442695
    %v307 = vpow.pop %v306
    %v308 = vmul.f32 %v295, 1.442695
    %v309 = vpow.pop %v308
    %v310 = vmul.f32 %v296, 1.442695
    %v311 = vpow.pop %v310
    %v312 = vmul.f32 %v297, 1.442695
    %v313 = vpow.pop %v312
    %v314 = vrot.slane %v299, 4
    %v315 = vadd.f32 %v299, %v314
    %v316 = vrot.slane %v315, 2
    %v317 = vadd.f32 %v315, %v316
    %v318 = vrot.slane %v317, 1
    %v319 = vadd.f32 %v317, %v318
    %v320 = vrot.slane %v301, 4
    %v321 = vadd.f32 %v301, %v320
    %v322 = vrot.slane %v321, 2
    %v323 = vadd.f32 %v321, %v322
    %v324 = vrot.slane %v323, 1
    %v325 = vadd.f32 %v323, %v324
    %v326 = vrot.slane %v303, 4
    %v327 = vadd.f32 %v303, %v326
    %v328 = vrot.slane %v327, 2
    %v329 = vadd.f32 %v327, %v328
    %v330 = vrot.slane %v329, 1
    %v331 = vadd.f32 %v329, %v330
    %v332 = vrot.slane %v305, 4
    %v333 = vadd.f32 %v305, %v332
    %v334 = vrot.slane %v333, 2
    %v335 = vadd.f32 %v333, %v334
    %v336 = vrot.slane %v335, 1
    %v337 = vadd.f32 %v335, %v336
    %v338 = vrot.slane %v307, 4
    %v339 = vadd.f32 %v307, %v338
    %v340 = vrot.slane %v339, 2
    %v341 = vadd.f32 %v339, %v340
    %v342 = vrot.slane %v341, 1
    %v343 = vadd.f32 %v341, %v342
    %v344 = vrot.slane %v309, 4
    %v345 = vadd.f32 %v309, %v344
    %v346 = vrot.slane %v345, 2
    %v347 = vadd.f32 %v345, %v346
    %v348 = vrot.slane %v347, 1
    %v349 = vadd.f32 %v347, %v348
    %v350 = vrot.slane %v311, 4
    %v351 = vadd.f32 %v311, %v350
    %v352 = vrot.slane %v351, 2
    %v353 = vadd.f32 %v351, %v352
    %v354 = vrot.slane %v353, 1
    %v355 = vadd.f32 %v353, %v354
    %v356 = vrot.slane %v313, 4
    %v357 = vadd.f32 %v313, %v356
    %v358 = vrot.slane %v357, 2
    %v359 = vadd.f32 %v357, %v358
    %v360 = vrot.slane %v359, 1
    %v361 = vadd.f32 %v359, %v360
    %v362 = vrcp.pop %v319
    %v363 = vmul.f32 1.0, %v362
    %v364 = vrcp.pop %v325
    %v365 = vmul.f32 1.0, %v364
    %v366 = vrcp.pop %v331
    %v367 = vmul.f32 1.0, %v366
    %v368 = vrcp.pop %v337
    %v369 = vmul.f32 1.0, %v368
    %v370 = vrcp.pop %v343
    %v371 = vmul.f32 1.0, %v370
    %v372 = vrcp.pop %v349
    %v373 = vmul.f32 1.0, %v372
    %v374 = vrcp.pop %v355
    %v375 = vmul.f32 1.0, %v374
    %v376 = vrcp.pop %v361
    %v377 = vmul.f32 1.0, %v376
    %v378 = vmul.f32 %v299, %v363
    %v379 = vmul.f32 %v301, %v365
    %v380 = vmul.f32 %v303, %v367
    %v381 = vmul.f32 %v305, %v369
    %v382 = vmul.f32 %v307, %v371
    %v383 = vmul.f32 %v309, %v373
    %v384 = vmul.f32 %v311, %v375
    %v385 = vmul.f32 %v313, %v377
    %v386 = vmul.f32 %v378, %v52
    %v387 = vmul.f32 %v379, %v53
    %v388 = vmul.f32 %v380, %v54
    %v389 = vmul.f32 %v381, %v55
    %v390 = vmul.f32 %v382, %v56
    %v391 = vmul.f32 %v383, %v57
    %v392 = vmul.f32 %v384, %v58
    %v393 = vmul.f32 %v385, %v59
    %v394 = vsel %vm66, %v386, 0.0
    %v395 = vrot.slane %v394, 4
    %v396 = vadd.f32 %v394, %v395
    %v397 = vrot.slane %v396, 2
    %v398 = vadd.f32 %v396, %v397
    %v399 = vrot.slane %v398, 1
    %v400 = vadd.f32 %v398, %v399
    %v401 = vsel %vm66, %v387, 0.0
    %v402 = vrot.slane %v401, 4
    %v403 = vadd.f32 %v401, %v402
    %v404 = vrot.slane %v403, 2
    %v405 = vadd.f32 %v403, %v404
    %v406 = vrot.slane %v405, 1
    %v407 = vadd.f32 %v405, %v406
    %v408 = vsel %vm66, %v388, 0.0
    %v409 = vrot.slane %v408, 4
    %v410 = vadd.f32 %v408, %v409
    %v411 = vrot.slane %v410, 2
    %v412 = vadd.f32 %v410, %v411
    %v413 = vrot.slane %v412, 1
    %v414 = vadd.f32 %v412, %v413
    %v415 = vsel %vm66, %v389, 0.0
    %v416 = vrot.slane %v415, 4
    %v417 = vadd.f32 %v415, %v416
    %v418 = vrot.slane %v417, 2
    %v419 = vadd.f32 %v417, %v418
    %v420 = vrot.slane %v419, 1
    %v421 = vadd.f32 %v419, %v420
    %v422 = vsel %vm66, %v390, 0.0
    %v423 = vrot.slane %v422, 4
    %v424 = vadd.f32 %v422, %v423
    %v425 = vrot.slane %v424, 2
    %v426 = vadd.f32 %v424, %v425
    %v427 = vrot.slane %v426, 1
    %v428 = vadd.f32 %v426, %v427
    %v429 = vsel %vm66, %v391, 0.0
    %v430 = vrot.slane %v429, 4
    %v431 = vadd.f32 %v429, %v430
    %v432 = vrot.slane %v431, 2
    %v433 = vadd.f32 %v431, %v432
    %v434 = vrot.slane %v433, 1
    %v435 = vadd.f32 %v433, %v434
    %v436 = vsel %vm66, %v392, 0.0
    %v437 = vrot.slane %v436, 4
    %v438 = vadd.f32 %v436, %v437
    %v439 = vrot.slane %v438, 2
    %v440 = vadd.f32 %v438, %v439
    %v441 = vrot.slane %v440, 1
    %v442 = vadd.f32 %v440, %v441
    %v443 = vsel %vm66, %v393, 0.0
    %v444 = vrot.slane %v443, 4
    %v445 = vadd.f32 %v443, %v444
    %v446 = vrot.slane %v445, 2
    %v447 = vadd.f32 %v445, %v446
    %v448 = vrot.slane %v447, 1
    %v449 = vadd.f32 %v447, %v448
    %v450 = vadd.f32 %v400, 0.0
    %v451 = vadd.f32 %v407, 0.0
    %v452 = vadd.f32 %v414, 0.0
    %v453 = vadd.f32 %v421, 0.0
    %v454 = vadd.f32 %v428, 0.0
    %v455 = vadd.f32 %v435, 0.0
    %v456 = vadd.f32 %v442, 0.0
    %v457 = vadd.f32 %v449, 0.0
    %vm466 = vcmask 1041409
    %v467 = vsel %vm466, %v451, %v450
    %vm468 = vcmask 1042434
    %v469 = vsel %vm468, %v452, %v467
    %vm470 = vcmask 1043459
    %v471 = vsel %vm470, %v453, %v469
    %vm472 = vcmask 1044484
    %v473 = vsel %vm472, %v454, %v471
    %vm474 = vcmask 1045509
    %v475 = vsel %vm474, %v455, %v473
    %vm476 = vcmask 1046534
    %v477 = vsel %vm476, %v456, %v475
    %vm478 = vcmask 1047559
    %v479 = vsel %vm478, %v457, %v477
    %481 = vst.msk [vmem:[#allocation7] sm:$0xff] %vm66, %v479
    // Predicated region
    $region26: #{tpu_custom_call.1} parent=1 // pred_check
      _
    $region27: #{tpu_custom_call.1} parent=1 // pred_check_branch
      %483 = sbr.rel (0) target = $region29
    $region28: #{tpu_custom_call.1} parent=1 // pred_region
      %s485 = ssub.s32 128, 128
      %486 = vsyncadd [#allocation4], %s485
      %s488 = sshll.u32 [#allocation7], 4
      %s489 = int_to_ptr.vmem [resolvable:$true] %s488
      %491 = dma.vmem_to_hbm [thread:$0]  %s489, 128, %s4, [#allocation4]
    $region29: #{tpu_custom_call.1} parent=1 // pred_fallthru
      _
    // Predicated region
    $region30: #{tpu_custom_call.1} parent=1 // pred_check
      _
    $region31: #{tpu_custom_call.1} parent=1 // pred_check_branch
      %493 = sbr.rel (0) target = $region33
    $region32: #{tpu_custom_call.1} parent=1 // pred_region
      %494 = dma.done [#allocation4], 128
    $region33: #{tpu_custom_call.1} parent=1 // pred_fallthru
      _
    %495 = vsyncpa [#allocation3], 1
    %496 = vsyncpa [#allocation6], 1
    %497 = vsyncpa [#allocation4], 1

</llo_original>
